<compile_context>
chip_gen: v6e
topology: v6e:2x2x1
jax: 0.10.0
libtpu: 0.0.40
codegen_flags: <defaults>
</compile_context>

<pallas_src>
import functools

import jax
import jax.numpy as jnp
from jax import lax
from jax.experimental import pallas as pl
from jax.experimental.pallas import tpu as pltpu

H_PAD = 128        # padded hidden (10 real + 1 bias-ones row); lane-dense MXU tile
O_PAD = 8          # padded num_outputs (sublane-aligned)
BLOCK_B_MAX = 512  # batch tile along the lane axis for large batches


def _discrete_model_kernel(x_ref, w1b1_ref, w2t_ref, o_ref, m_sc, l_sc,
                           *, batch, block_b, need_mask):
    # x_ref  : [1, Bt]          w1b1_ref: [H_pad, 2]   (col0 = w1, col1 = b1, row
    #                                                    `hidden` of col1 == 1.0)
    # w2t_ref: [O_pad, H_pad]   (col `hidden` carries b2)
    # o_ref  : [O_pad, Bt]      m_sc/l_sc: [O_pad, 1] f32 running max / sum-exp
    phase = pl.program_id(0)
    tile = pl.program_id(1)

    # ---- recomputed per (phase, tile): two tiny layers ---------------------
    # Layer 1: VPU broadcast outer-product + fused bias (no MXU pass, no K pad).
    w1 = w1b1_ref[:, 0:1]                                  # [H_pad, 1]
    b1 = w1b1_ref[:, 1:2]                                  # [H_pad, 1]
    h = w1 * x_ref[...] + b1                               # [H_pad, Bt]
    # Layer 2: MXU matmul; b2 arrives via the constant-ones row of h.
    logits = jnp.dot(w2t_ref[...], h,
                     preferred_element_type=jnp.float32)   # [O_pad, Bt]

    if need_mask:  # only traced in when the batch was padded to a tile multiple
        col = tile * block_b + lax.broadcasted_iota(jnp.int32, logits.shape, 1)
        logits = jnp.where(col < batch, logits, -jnp.inf)

    @pl.when(jnp.logical_and(phase == 0, tile == 0))
    def _():
        m_sc[...] = jnp.full_like(m_sc, -jnp.inf)
        l_sc[...] = jnp.zeros_like(l_sc)

    @pl.when(phase == 0)
    def _():
        # Pass 1: online per-output-row max / sum-of-exp over the batch (lanes).
        m_old = m_sc[...]
        m_new = jnp.maximum(m_old, jnp.max(logits, axis=-1, keepdims=True))
        l_sc[...] = (l_sc[...] * jnp.exp(m_old - m_new)
                     + jnp.sum(jnp.exp(logits - m_new), axis=-1, keepdims=True))
        m_sc[...] = m_new
        o_ref[...] = jnp.zeros_like(o_ref)   # deterministic phase-0 writeback

    @pl.when(phase == 1)
    def _():
        # Pass 2: normalize with global stats (EUP reciprocal + VPU multiply).
        inv = pl.reciprocal(l_sc[...], approx=False)  # approx=True once parity
        o_ref[...] = (jnp.exp(logits - m_sc[...]) * inv).astype(o_ref.dtype)


def init_discrete_model_params(key, in_dim=1, hidden=10, num_outputs=2,
                               dtype=jnp.float32):
    """nn.Linear-style U(-1/sqrt(fan_in), 1/sqrt(fan_in)) init.

    Returns (reference_params, packed_params).  Packed copies (bias folding +
    padding) are built once here so the hot path does no per-call reshapes.
    """
    assert in_dim == 1, "layer-1 broadcast path assumes in_dim == 1"
    assert hidden + 1 <= H_PAD and num_outputs <= O_PAD

    def linear_init(k, d_in, d_out):
        kw, kb = jax.random.split(k)
        bound = 1.0 / jnp.sqrt(jnp.float32(d_in))
        w = jax.random.uniform(kw, (d_in, d_out), dtype, -bound, bound)
        b = jax.random.uniform(kb, (1, d_out), dtype, -bound, bound)
        return w, b

    k1, k2 = jax.random.split(key)
    w1, b1 = linear_init(k1, in_dim, hidden)        # [1, H], [1, H]
    w2, b2 = linear_init(k2, hidden, num_outputs)   # [H, O], [1, O]

    # Packed layer 1: [H_pad, 2]; col0 = w1 column, col1 = b1 column; the extra
    # row `hidden` of col1 is 1.0 so h carries a constant-ones row for b2.
    w1b1 = jnp.zeros((H_PAD, 2), dtype)
    w1b1 = w1b1.at[:hidden, 0].set(w1[0, :])
    w1b1 = w1b1.at[:hidden, 1].set(b1[0, :])
    w1b1 = w1b1.at[hidden, 1].set(1.0)

    # Packed layer 2: [O_pad, H_pad]; b2 folded into column `hidden`.
    w2t = jnp.zeros((O_PAD, H_PAD), dtype)
    w2t = w2t.at[:num_outputs, :hidden].set(w2.T)
    w2t = w2t.at[:num_outputs, hidden].set(b2[0, :])

    return (w1, b1, w2, b2), (w1b1, w2t)


@functools.partial(jax.jit, static_argnames=("num_outputs",))
def discrete_model_forward(x, packed_params, *, num_outputs=2):
    """Fused Linear(1,10) -> Linear(10,num_outputs) -> softmax(dim=0)."""
    w1b1, w2t = packed_params
    batch = x.shape[0]
    o_pad, h_pad = w2t.shape

    # [B, 1] -> [1, B]: batch on the lane axis (free reshape since in_dim == 1).
    x_t = x.reshape(1, batch)

    block_b = batch if batch <= BLOCK_B_MAX else BLOCK_B_MAX
    n_tiles = pl.cdiv(batch, block_b)
    b_pad = n_tiles * block_b
    need_mask = b_pad != batch
    if need_mask:
        x_t = jnp.pad(x_t, ((0, 0), (0, b_pad - batch)))

    kernel = functools.partial(_discrete_model_kernel, batch=batch,
                               block_b=block_b, need_mask=need_mask)

    cost = pl.CostEstimate(
        flops=2 * (h_pad * b_pad + o_pad * h_pad * b_pad),
        transcendentals=2 * o_pad * b_pad,                    # exp in both passes
        bytes_accessed=4 * (2 * x_t.size + w1b1.size + w2t.size + o_pad * b_pad),
    )

    out_t = pl.pallas_call(
        kernel,
        out_shape=jax.ShapeDtypeStruct((o_pad, b_pad), x.dtype),
        grid=(2, n_tiles),  # (phase, batch tile); phase outermost
        in_specs=[
            pl.BlockSpec((1, block_b), lambda p, j: (0, j)),
            pl.BlockSpec(w1b1.shape, lambda p, j: (0, 0)),
            pl.BlockSpec(w2t.shape, lambda p, j: (0, 0)),
        ],
        out_specs=pl.BlockSpec((o_pad, block_b), lambda p, j: (0, j)),
        scratch_shapes=[
            pltpu.VMEM((o_pad, 1), jnp.float32),  # running max
            pltpu.VMEM((o_pad, 1), jnp.float32),  # running sum of exp
        ],
        compiler_params=pltpu.CompilerParams(
            # Both axes carry the scratch reduction -> sequential.
            dimension_semantics=("arbitrary", "arbitrary")),
        cost_estimate=cost,
    )(x_t, w1b1, w2t)

    # Back to the PyTorch [B, num_outputs] layout (tiny slice + transpose).
    return out_t[:num_outputs, :batch].T


def discrete_model_ref(x, params):
    w1, b1, w2, b2 = params
    logits = (x @ w1 + b1) @ w2 + b2
    return jax.nn.softmax(logits, axis=0)


if __name__ == "__main__":
    key = jax.random.PRNGKey(0)
    batch, in_dim, hidden, num_outputs = 8, 1, 10, 2

    key, kx, kp = jax.random.split(key, 3)
    x = jax.random.normal(kx, (batch, in_dim), jnp.float32)
    params, packed_params = init_discrete_model_params(
        kp, in_dim=in_dim, hidden=hidden, num_outputs=num_outputs)

    out = jax.block_until_ready(
        discrete_model_forward(x, packed_params, num_outputs=num_outputs))

    ref = discrete_model_ref(x, params)
    assert out.shape == (batch, num_outputs)
    assert jnp.allclose(out, ref, atol=1e-5, rtol=1e-5), "mismatch vs reference"
    # each output column is a probability distribution over the batch (dim=0)
    assert jnp.allclose(out.sum(axis=0), jnp.ones((num_outputs,)), atol=1e-5)

    print("KERNEL_OK")
</pallas_src>

<mosaic_0001>
module attributes {stable_mosaic.version = 11 : i64} {
  func.func @_discrete_model_kernel(%arg0: i32, %arg1: i32, %arg2: memref<1x8xf32, #tpu.memory_space<vmem>>, %arg3: memref<128x2xf32, #tpu.memory_space<vmem>>, %arg4: memref<8x128xf32, #tpu.memory_space<vmem>>, %arg5: memref<8x8xf32, #tpu.memory_space<vmem>>, %arg6: memref<8x1xf32, #tpu.memory_space<vmem>>, %arg7: memref<8x1xf32, #tpu.memory_space<vmem>>) attributes {dimension_semantics = [#tpu.dimension_semantics<arbitrary>, #tpu.dimension_semantics<arbitrary>], iteration_bounds = array<i64: 2, 1>, scalar_prefetch = 0 : i64, scratch_operands = 2 : i64, tpu.core_type = #tpu.core_type<tc>, window_params = [{transform_indices = @transform_0, window_bounds = array<i64: 1, 8>}, {pipeline_mode = #tpu.pipeline_mode<synchronous>, transform_indices = @transform_1, window_bounds = array<i64: 128, 2>}, {pipeline_mode = #tpu.pipeline_mode<synchronous>, transform_indices = @transform_2, window_bounds = array<i64: 8, 128>}, {transform_indices = @transform_3, window_bounds = array<i64: 8, 8>}]} {
    %c0 = arith.constant 0 : index
    %c0_0 = arith.constant 0 : index
    %0 = vector.load %arg3[%c0, %c0_0] : memref<128x2xf32, #tpu.memory_space<vmem>>, vector<128x1xf32>
    %c0_1 = arith.constant 0 : index
    %c1 = arith.constant 1 : index
    %1 = vector.load %arg3[%c0_1, %c1] : memref<128x2xf32, #tpu.memory_space<vmem>>, vector<128x1xf32>
    %c0_2 = arith.constant 0 : index
    %c0_3 = arith.constant 0 : index
    %2 = vector.load %arg2[%c0_2, %c0_3] : memref<1x8xf32, #tpu.memory_space<vmem>>, vector<1x8xf32>
    %3 = vector.broadcast %0 : vector<128x1xf32> to vector<128x8xf32>
    %4 = vector.broadcast %2 : vector<1x8xf32> to vector<128x8xf32>
    %5 = arith.mulf %3, %4 : vector<128x8xf32>
    %6 = vector.broadcast %1 : vector<128x1xf32> to vector<128x8xf32>
    %7 = arith.addf %5, %6 : vector<128x8xf32>
    %c0_4 = arith.constant 0 : index
    %c0_5 = arith.constant 0 : index
    %8 = vector.load %arg4[%c0_4, %c0_5] : memref<8x128xf32, #tpu.memory_space<vmem>>, vector<8x128xf32>
    %cst = arith.constant dense<0.000000e+00> : vector<8x8xf32>
    %9 = tpu.matmul %8, %7, %cst {dimension_numbers = #tpu.dot_dimension_numbers<[1], [0], [0], [1], [0, 0, 1, 1], [], []>} : vector<8x128xf32>, vector<128x8xf32>, vector<8x8xf32> -> vector<8x8xf32>
    %c0_i32 = arith.constant 0 : i32
    %10 = arith.cmpi eq, %arg0, %c0_i32 : i32
    %c0_i32_6 = arith.constant 0 : i32
    %11 = arith.cmpi eq, %arg1, %c0_i32_6 : i32
    %12 = arith.andi %10, %11 : i1
    %13 = arith.extui %12 : i1 to i32
    %c0_i32_7 = arith.constant 0 : i32
    %14 = arith.cmpi ne, %13, %c0_i32_7 : i32
    scf.if %14 {
      %cst_11 = arith.constant 0xFF800000 : f32
      %21 = vector.broadcast %cst_11 : f32 to vector<8x1xf32>
      %c0_12 = arith.constant 0 : index
      %c0_13 = arith.constant 0 : index
      %22 = vector.load %arg6[%c0_12, %c0_13] : memref<8x1xf32, #tpu.memory_space<vmem>>, vector<8x1xf32>
      tpu.vector_store %arg6[%c0_12, %c0_13], %21 {strides = array<i32>} : memref<8x1xf32, #tpu.memory_space<vmem>>, vector<8x1xf32>,
      %cst_14 = arith.constant 0.000000e+00 : f32
      %23 = vector.broadcast %cst_14 : f32 to vector<8x1xf32>
      %c0_15 = arith.constant 0 : index
      %c0_16 = arith.constant 0 : index
      %24 = vector.load %arg7[%c0_15, %c0_16] : memref<8x1xf32, #tpu.memory_space<vmem>>, vector<8x1xf32>
      tpu.vector_store %arg7[%c0_15, %c0_16], %23 {strides = array<i32>} : memref<8x1xf32, #tpu.memory_space<vmem>>, vector<8x1xf32>,
    } else {
    }
    %c0_i32_8 = arith.constant 0 : i32
    %15 = arith.cmpi eq, %arg0, %c0_i32_8 : i32
    %16 = arith.extui %15 : i1 to i32
    %c0_i32_9 = arith.constant 0 : i32
    %17 = arith.cmpi ne, %16, %c0_i32_9 : i32
    scf.if %17 {
      %c0_11 = arith.constant 0 : index
      %c0_12 = arith.constant 0 : index
      %21 = vector.load %arg6[%c0_11, %c0_12] : memref<8x1xf32, #tpu.memory_space<vmem>>, vector<8x1xf32>
      %cst_13 = arith.constant dense<0xFF800000> : vector<8xf32>
      %22 = vector.multi_reduction <maximumf>, %9, %cst_13 [1] : vector<8x8xf32> to vector<8xf32>
      %23 = vector.shape_cast %22 : vector<8xf32> to vector<8x1xf32>
      %24 = arith.maximumf %21, %23 : vector<8x1xf32>
      %c0_14 = arith.constant 0 : index
      %c0_15 = arith.constant 0 : index
      %25 = vector.load %arg7[%c0_14, %c0_15] : memref<8x1xf32, #tpu.memory_space<vmem>>, vector<8x1xf32>
      %26 = arith.subf %21, %24 : vector<8x1xf32>
      %27 = math.exp %26 : vector<8x1xf32>
      %28 = arith.mulf %25, %27 : vector<8x1xf32>
      %29 = vector.broadcast %24 : vector<8x1xf32> to vector<8x8xf32>
      %30 = arith.subf %9, %29 : vector<8x8xf32>
      %31 = math.exp %30 : vector<8x8xf32>
      %cst_16 = arith.constant dense<0.000000e+00> : vector<8xf32>
      %32 = vector.multi_reduction <add>, %31, %cst_16 [1] : vector<8x8xf32> to vector<8xf32>
      %33 = vector.shape_cast %32 : vector<8xf32> to vector<8x1xf32>
      %34 = arith.addf %28, %33 : vector<8x1xf32>
      %c0_17 = arith.constant 0 : index
      %c0_18 = arith.constant 0 : index
      %35 = vector.load %arg7[%c0_17, %c0_18] : memref<8x1xf32, #tpu.memory_space<vmem>>, vector<8x1xf32>
      tpu.vector_store %arg7[%c0_17, %c0_18], %34 {strides = array<i32>} : memref<8x1xf32, #tpu.memory_space<vmem>>, vector<8x1xf32>,
      %c0_19 = arith.constant 0 : index
      %c0_20 = arith.constant 0 : index
      %36 = vector.load %arg6[%c0_19, %c0_20] : memref<8x1xf32, #tpu.memory_space<vmem>>, vector<8x1xf32>
      tpu.vector_store %arg6[%c0_19, %c0_20], %24 {strides = array<i32>} : memref<8x1xf32, #tpu.memory_space<vmem>>, vector<8x1xf32>,
      %cst_21 = arith.constant 0.000000e+00 : f32
      %37 = vector.broadcast %cst_21 : f32 to vector<8x8xf32>
      %c0_22 = arith.constant 0 : index
      %c0_23 = arith.constant 0 : index
      %38 = vector.load %arg5[%c0_22, %c0_23] : memref<8x8xf32, #tpu.memory_space<vmem>>, vector<8x8xf32>
      tpu.vector_store %arg5[%c0_22, %c0_23], %37 {strides = array<i32>} : memref<8x8xf32, #tpu.memory_space<vmem>>, vector<8x8xf32>,
    } else {
    }
    %c1_i32 = arith.constant 1 : i32
    %18 = arith.cmpi eq, %arg0, %c1_i32 : i32
    %19 = arith.extui %18 : i1 to i32
    %c0_i32_10 = arith.constant 0 : i32
    %20 = arith.cmpi ne, %19, %c0_i32_10 : i32
    scf.if %20 {
      %c0_11 = arith.constant 0 : index
      %c0_12 = arith.constant 0 : index
      %21 = vector.load %arg7[%c0_11, %c0_12] : memref<8x1xf32, #tpu.memory_space<vmem>>, vector<8x1xf32>
      %22 = tpu.reciprocal %21 : vector<8x1xf32> -> vector<8x1xf32>
      %c0_13 = arith.constant 0 : index
      %c0_14 = arith.constant 0 : index
      %23 = vector.load %arg6[%c0_13, %c0_14] : memref<8x1xf32, #tpu.memory_space<vmem>>, vector<8x1xf32>
      %24 = vector.broadcast %23 : vector<8x1xf32> to vector<8x8xf32>
      %25 = arith.subf %9, %24 : vector<8x8xf32>
      %26 = math.exp %25 : vector<8x8xf32>
      %27 = vector.broadcast %22 : vector<8x1xf32> to vector<8x8xf32>
      %28 = arith.mulf %26, %27 : vector<8x8xf32>
      %c0_15 = arith.constant 0 : index
      %c0_16 = arith.constant 0 : index
      %29 = vector.load %arg5[%c0_15, %c0_16] : memref<8x8xf32, #tpu.memory_space<vmem>>, vector<8x8xf32>
      tpu.vector_store %arg5[%c0_15, %c0_16], %28 {strides = array<i32>} : memref<8x8xf32, #tpu.memory_space<vmem>>, vector<8x8xf32>,
    } else {
    }
    return
  }
  func.func @transform_0(%arg0: i32, %arg1: i32) -> (i32, i32) {
    %c0_i32 = arith.constant 0 : i32
    %c0_i32_0 = arith.constant 0 : i32
    return %c0_i32, %arg1 : i32, i32
  }
  func.func @transform_1(%arg0: i32, %arg1: i32) -> (i32, i32) {
    %c0_i32 = arith.constant 0 : i32
    %c0_i32_0 = arith.constant 0 : i32
    %c0_i32_1 = arith.constant 0 : i32
    return %c0_i32, %c0_i32_0 : i32, i32
  }
  func.func @transform_2(%arg0: i32, %arg1: i32) -> (i32, i32) {
    %c0_i32 = arith.constant 0 : i32
    %c0_i32_0 = arith.constant 0 : i32
    %c0_i32_1 = arith.constant 0 : i32
    return %c0_i32, %c0_i32_0 : i32, i32
  }
  func.func @transform_3(%arg0: i32, %arg1: i32) -> (i32, i32) {
    %c0_i32 = arith.constant 0 : i32
    %c0_i32_0 = arith.constant 0 : i32
    return %c0_i32, %arg1 : i32, i32
  }
}

</mosaic_0001>

<llo_original>
// kernel: discrete_model_forward.1
$region0: #{discrete_model_forward.1}
  #allocation0 [shape = 'u32[]', space=smem, size = 0x4, offset = 0x4, fixed_abs, tag = 'smem constant byte address 0x4 - core index']
  #allocation1 [shape = 'u32[144,128]{1,0:T(1,128)}', space=vmem, size = 0x12000, scoped, tag = 'internal scratch']
  #allocation2 [shape = 'f32[8,1]{1,0:T(8,128)}', space=vmem, size = 0x1000, scoped, tag = 'scratch operand']
  #allocation3 [shape = 'f32[8,1]{1,0:T(8,128)}', space=vmem, size = 0x1000, scoped, tag = 'scratch operand']
  %s0 = inlined_call_operand.vmem [shape: f32[1,8], index: 0, kind: input, shape index: {}]
  %s1 = inlined_call_operand.vmem [shape: f32[128,2], index: 1, kind: input, shape index: {}]
  %s2 = inlined_call_operand.vmem [shape: f32[8,128], index: 2, kind: input, shape index: {}]
  %s3 = inlined_call_operand.vmem [shape: f32[8,8], index: 3, kind: output, shape index: {}]
  %s4 = sld [smem:[#allocation0]]
  $region57: #{discrete_model_forward.1} parent=0
    _
  %s6 = ssub.s32 1, %s4
  %s7 = scalar_select 0, %s6, %s4
  loop: start=0, step=1, limit=4
  $region2: #{discrete_model_forward.1} parent=0 // loop_pre_header
    _
  $region3: #{discrete_model_forward.1} parent=0 // loop_header
    %s9 = sphi 0, %s13
    %p10 = scmp.ge.s32.totalorder %s9, 4
    %s16 = sphi 0, %s28
    %s17 = sphi 0, %s24
    %s18 = sphi 0, %s16
    %s19 = sphi 0, %s17
    %s20 = sphi 0, %s18
    %s21 = sphi 0, %s19
    %s31 = sphi 0, %s33
    %s34 = sphi 0, %s31
    %s35 = sphi 0, %s34
    %s51 = sphi 0, %s35
    %s55 = sphi 0, %s55
    %s57 = sphi 0, %s55
    %s58 = sphi 0, %s57
    %s72 = sphi 0, %s58
    %s76 = sphi 0, %s76
    %s78 = sphi 0, %s76
    %s79 = sphi 0, %s78
    %s93 = sphi 0, %s79
    %s99 = sphi 0, %s101
    %s102 = sphi 0, %s99
    %s103 = sphi 0, %s102
    %s119 = sphi 0, %s103
  $region4: #{discrete_model_forward.1} parent=0 // loop_header_branch
    %12 = sbr.rel (%p10) target = $region8
  $region5: #{discrete_model_forward.1} parent=0 // loop_body
    %s14 = ssub.s32 %s9, 1
    %s15 = ssub.s32 %s9, 2
    %s22 = sadd.s32 1, %s17
    %p23 = scmp.ge.s32.totalorder %s22, 1
    %s24 = scalar_select %p23, 0, %s22
    %s25 = sadd.s32 1, %s16
    %s26 = scalar_select %p23, %s25, %s16
    %p27 = scmp.ge.s32.totalorder %s26, 2
    %s28 = scalar_select %p27, 0, %s26
    %s29 = ssub.s32 %s17, %s24
    %p30 = scmp.eq.s32.totalorder %s29, 0
    %s32 = sadd.s32 %s31, 1
    %s33 = scalar_select %p30, %s31, %s32
    %p36 = pneg %p30
    %p37 = scmp.eq.s32.totalorder %s9, 1
    %p38 = por %p36, %p37
    %p39 = scmp.ne.s32.totalorder %s31, %s34
    %p40 = scmp.eq.s32.totalorder %s9, 0
    %p41 = por %p39, %p40
    %p42 = scmp.ne.s32.totalorder %s31, %s34
    %p43 = scmp.eq.s32.totalorder %s14, 1
    %p44 = por %p42, %p43
    %p45 = scmp.ne.s32.totalorder %s34, %s35
    %p46 = scmp.eq.s32.totalorder %s14, 0
    %p47 = por %p45, %p46
    %p48 = scmp.ne.s32.totalorder %s34, %s35
    %p49 = scmp.eq.s32.totalorder %s15, 1
    %p50 = por %p48, %p49
    %p52 = scmp.ne.s32.totalorder %s35, %s51
    %p53 = scmp.eq.s32.totalorder %s15, 0
    %p54 = por %p52, %p53
    %s56 = sadd.s32 %s55, 1
    %p59 = scmp.eq.s32.totalorder %s9, 1
    %p60 = scmp.ne.s32.totalorder %s55, %s57
    %p61 = scmp.eq.s32.totalorder %s9, 0
    %p62 = por %p60, %p61
    %p63 = scmp.ne.s32.totalorder %s55, %s57
    %p64 = scmp.eq.s32.totalorder %s14, 1
    %p65 = por %p63, %p64
    %p66 = scmp.ne.s32.totalorder %s57, %s58
    %p67 = scmp.eq.s32.totalorder %s14, 0
    %p68 = por %p66, %p67
    %p69 = scmp.ne.s32.totalorder %s57, %s58
    %p70 = scmp.eq.s32.totalorder %s15, 1
    %p71 = por %p69, %p70
    %p73 = scmp.ne.s32.totalorder %s58, %s72
    %p74 = scmp.eq.s32.totalorder %s15, 0
    %p75 = por %p73, %p74
    %s77 = sadd.s32 %s76, 1
    %p80 = scmp.eq.s32.totalorder %s9, 1
    %p81 = scmp.ne.s32.totalorder %s76, %s78
    %p82 = scmp.eq.s32.totalorder %s9, 0
    %p83 = por %p81, %p82
    %p84 = scmp.ne.s32.totalorder %s76, %s78
    %p85 = scmp.eq.s32.totalorder %s14, 1
    %p86 = por %p84, %p85
    %p87 = scmp.ne.s32.totalorder %s78, %s79
    %p88 = scmp.eq.s32.totalorder %s14, 0
    %p89 = por %p87, %p88
    %p90 = scmp.ne.s32.totalorder %s78, %s79
    %p91 = scmp.eq.s32.totalorder %s15, 1
    %p92 = por %p90, %p91
    %p94 = scmp.ne.s32.totalorder %s79, %s93
    %p95 = scmp.eq.s32.totalorder %s15, 0
    %p96 = por %p94, %p95
    %s97 = ssub.s32 %s17, %s24
    %p98 = scmp.eq.s32.totalorder %s97, 0
    %s100 = sadd.s32 %s99, 1
    %s101 = scalar_select %p98, %s99, %s100
    %p104 = pneg %p98
    %p105 = scmp.eq.s32.totalorder %s9, 1
    %p106 = por %p104, %p105
    %p107 = scmp.ne.s32.totalorder %s99, %s102
    %p108 = scmp.eq.s32.totalorder %s9, 0
    %p109 = por %p107, %p108
    %p110 = scmp.ne.s32.totalorder %s99, %s102
    %p111 = scmp.eq.s32.totalorder %s14, 1
    %p112 = por %p110, %p111
    %p113 = scmp.ne.s32.totalorder %s102, %s103
    %p114 = scmp.eq.s32.totalorder %s14, 0
    %p115 = por %p113, %p114
    %p116 = scmp.ne.s32.totalorder %s102, %s103
    %p117 = scmp.eq.s32.totalorder %s15, 1
    %p118 = por %p116, %p117
    %p120 = scmp.ne.s32.totalorder %s103, %s119
    %p121 = scmp.eq.s32.totalorder %s15, 0
    %p122 = por %p120, %p121
    %p123 = scmp.le.s32.totalorder 1, %s9
    %p124 = scmp.lt.s32.totalorder %s9, 3
    %p125 = pnand %p123, %p124
    %p126 = pneg %p125
    // Predicated region
    $region9: #{discrete_model_forward.1} parent=5 // pred_check
      _
    $region10: #{discrete_model_forward.1} parent=5 // pred_check_branch
      %128 = sbr.rel (%p125) target = $region12
    $region11: #{discrete_model_forward.1} parent=5 // pred_region
      %s129 = ssub.s32 %s9, 1
      // Predicated region
      $region13: #{discrete_model_forward.1} parent=11 // pred_check
        %p130 = pneg %p47
      $region14: #{discrete_model_forward.1} parent=11 // pred_check_branch
        %132 = sbr.rel (%p130) target = $region16
      $region15: #{discrete_model_forward.1} parent=11 // pred_region
        %p133 = scmp.lt.s32.totalorder %s19, 0
        %s134 = scalar_select %p133, %s19, 0
        %s135 = scalar_lea.vmem %s0, %s134
      $region16: #{discrete_model_forward.1} parent=11 // pred_fallthru
        _
      // Predicated region
      $region17: #{discrete_model_forward.1} parent=11 // pred_check
        %p136 = pneg %p68
      $region18: #{discrete_model_forward.1} parent=11 // pred_check_branch
        %138 = sbr.rel (%p136) target = $region20
      $region19: #{discrete_model_forward.1} parent=11 // pred_region
        _
      $region20: #{discrete_model_forward.1} parent=11 // pred_fallthru
        _
      // Predicated region
      $region21: #{discrete_model_forward.1} parent=11 // pred_check
        %p139 = pneg %p89
      $region22: #{discrete_model_forward.1} parent=11 // pred_check_branch
        %141 = sbr.rel (%p139) target = $region24
      $region23: #{discrete_model_forward.1} parent=11 // pred_region
        _
      $region24: #{discrete_model_forward.1} parent=11 // pred_fallthru
        _
    $region12: #{discrete_model_forward.1} parent=5 // pred_fallthru
      _
    %p142 = scmp.lt.s32.totalorder %s9, 2
    // Predicated region
    $region25: #{discrete_model_forward.1} parent=5 // pred_check
      %p143 = pneg %p142
    $region26: #{discrete_model_forward.1} parent=5 // pred_check_branch
      %145 = sbr.rel (%p143) target = $region28
    $region27: #{discrete_model_forward.1} parent=5 // pred_region
      _
    $region28: #{discrete_model_forward.1} parent=5 // pred_fallthru
      _
    %p146 = scmp.le.s32.totalorder 1, %s9
    %p147 = scmp.lt.s32.totalorder %s9, 3
    %p148 = pnand %p146, %p147
    %p149 = pneg %p148
    // Predicated region
    $region29: #{discrete_model_forward.1} parent=5 // pred_check
      _
    $region30: #{discrete_model_forward.1} parent=5 // pred_check_branch
      %151 = sbr.rel (%p148) target = $region32
    $region31: #{discrete_model_forward.1} parent=5 // pred_region
      %s152 = ssub.s32 %s9, 1
      %p153 = scmp.lt.s32.totalorder %s19, 0
      %s154 = scalar_select %p153, %s19, 0
      %s155 = scalar_lea.vmem %s0, %s154
      %p156 = pneg %p47
      %p157 = pneg %p44
      %p158 = pneg %p68
      %p159 = pneg %p65
      %p160 = pneg %p89
      %p161 = pneg %p86
      %p162 = pneg %p115
      %p163 = pneg %p112
      %p164 = scmp.lt.s32.totalorder %s19, 0
      %s165 = scalar_select %p164, %s19, 0
      %s166 = smul.addr %s165, 8
      %s167 = scalar_lea.vmem %s3, %s166
      %p168 = scmp.lt.s32.totalorder %s19, 0
      %s169 = scalar_select %p168, %s19, 0
      %s170 = scalar_lea.vmem %s0, %s169
      %p171 = scmp.lt.s32.totalorder %s19, 0
      %s172 = scalar_select %p171, %s19, 0
      %s173 = smul.addr %s172, 8
      %s174 = scalar_lea.vmem %s3, %s173
      %v175 = vld [vmem:[%s1] sm:$0xff]
      %v176 = vld [vmem:[%s1 + $0x8] sm:$0xff]
      %v177 = vld [vmem:[%s1 + $0x10] sm:$0xff]
      %v178 = vld [vmem:[%s1 + $0x18] sm:$0xff]
      %v179 = vld [vmem:[%s1 + $0x20] sm:$0xff]
      %v180 = vld [vmem:[%s1 + $0x28] sm:$0xff]
      %v181 = vld [vmem:[%s1 + $0x30] sm:$0xff]
      %v182 = vld [vmem:[%s1 + $0x38] sm:$0xff]
      %v183 = vld [vmem:[%s1 + $0x40] sm:$0xff]
      %v184 = vld [vmem:[%s1 + $0x48] sm:$0xff]
      %v185 = vld [vmem:[%s1 + $0x50] sm:$0xff]
      %v186 = vld [vmem:[%s1 + $0x58] sm:$0xff]
      %v187 = vld [vmem:[%s1 + $0x60] sm:$0xff]
      %v188 = vld [vmem:[%s1 + $0x68] sm:$0xff]
      %v189 = vld [vmem:[%s1 + $0x70] sm:$0xff]
      %v190 = vld [vmem:[%s1 + $0x78] sm:$0xff]
      %v191 = vld [vmem:[%s170] sm:$0x1]
      %193 = vset.pattern.permute.xlu0 0
      %194 = vperm.xlu0 %193, %v175
      %v195 = vpop.permute.xlu0 %194
      %198 = vset.pattern.permute.xlu0 0
      %199 = vperm.xlu0 %198, %v176
      %v200 = vpop.permute.xlu0 %199
      %203 = vset.pattern.permute.xlu0 0
      %204 = vperm.xlu0 %203, %v177
      %v205 = vpop.permute.xlu0 %204
      %208 = vset.pattern.permute.xlu0 0
      %209 = vperm.xlu0 %208, %v178
      %v210 = vpop.permute.xlu0 %209
      %213 = vset.pattern.permute.xlu0 0
      %214 = vperm.xlu0 %213, %v179
      %v215 = vpop.permute.xlu0 %214
      %218 = vset.pattern.permute.xlu0 0
      %219 = vperm.xlu0 %218, %v180
      %v220 = vpop.permute.xlu0 %219
      %223 = vset.pattern.permute.xlu0 0
      %224 = vperm.xlu0 %223, %v181
      %v225 = vpop.permute.xlu0 %224
      %228 = vset.pattern.permute.xlu0 0
      %229 = vperm.xlu0 %228, %v182
      %v230 = vpop.permute.xlu0 %229
      %233 = vset.pattern.permute.xlu0 0
      %234 = vperm.xlu0 %233, %v183
      %v235 = vpop.permute.xlu0 %234
      %238 = vset.pattern.permute.xlu0 0
      %239 = vperm.xlu0 %238, %v184
      %v240 = vpop.permute.xlu0 %239
      %243 = vset.pattern.permute.xlu0 0
      %244 = vperm.xlu0 %243, %v185
      %v245 = vpop.permute.xlu0 %244
      %248 = vset.pattern.permute.xlu0 0
      %249 = vperm.xlu0 %248, %v186
      %v250 = vpop.permute.xlu0 %249
      %253 = vset.pattern.permute.xlu0 0
      %254 = vperm.xlu0 %253, %v187
      %v255 = vpop.permute.xlu0 %254
      %258 = vset.pattern.permute.xlu0 0
      %259 = vperm.xlu0 %258, %v188
      %v260 = vpop.permute.xlu0 %259
      %263 = vset.pattern.permute.xlu0 0
      %264 = vperm.xlu0 %263, %v189
      %v265 = vpop.permute.xlu0 %264
      %268 = vset.pattern.permute.xlu0 0
      %269 = vperm.xlu0 %268, %v190
      %v270 = vpop.permute.xlu0 %269
      %v273 = vlaneseq
      %v274 = vshrl.u32 %v273, 7
      %v275 = vsub.s32 0, %v274
      %v276 = vrot.slane %v191, %v275
      %v278 = vmul.f32 %v195, %v276
      %v279 = vmul.f32 %v200, %v276
      %v280 = vmul.f32 %v205, %v276
      %v281 = vmul.f32 %v210, %v276
      %v282 = vmul.f32 %v215, %v276
      %v283 = vmul.f32 %v220, %v276
      %v284 = vmul.f32 %v225, %v276
      %v285 = vmul.f32 %v230, %v276
      %v286 = vmul.f32 %v235, %v276
      %v287 = vmul.f32 %v240, %v276
      %v288 = vmul.f32 %v245, %v276
      %v289 = vmul.f32 %v250, %v276
      %v290 = vmul.f32 %v255, %v276
      %v291 = vmul.f32 %v260, %v276
      %v292 = vmul.f32 %v265, %v276
      %v293 = vmul.f32 %v270, %v276
      %294 = vset.pattern.permute.xlu0 1
      %295 = vperm.xlu0 %294, %v175
      %v296 = vpop.permute.xlu0 %295
      %298 = vset.pattern.permute.xlu0 1
      %299 = vperm.xlu0 %298, %v176
      %v300 = vpop.permute.xlu0 %299
      %302 = vset.pattern.permute.xlu0 1
      %303 = vperm.xlu0 %302, %v177
      %v304 = vpop.permute.xlu0 %303
      %306 = vset.pattern.permute.xlu0 1
      %307 = vperm.xlu0 %306, %v178
      %v308 = vpop.permute.xlu0 %307
      %310 = vset.pattern.permute.xlu0 1
      %311 = vperm.xlu0 %310, %v179
      %v312 = vpop.permute.xlu0 %311
      %314 = vset.pattern.permute.xlu0 1
      %315 = vperm.xlu0 %314, %v180
      %v316 = vpop.permute.xlu0 %315
      %318 = vset.pattern.permute.xlu0 1
      %319 = vperm.xlu0 %318, %v181
      %v320 = vpop.permute.xlu0 %319
      %322 = vset.pattern.permute.xlu0 1
      %323 = vperm.xlu0 %322, %v182
      %v324 = vpop.permute.xlu0 %323
      %326 = vset.pattern.permute.xlu0 1
      %327 = vperm.xlu0 %326, %v183
      %v328 = vpop.permute.xlu0 %327
      %330 = vset.pattern.permute.xlu0 1
      %331 = vperm.xlu0 %330, %v184
      %v332 = vpop.permute.xlu0 %331
      %334 = vset.pattern.permute.xlu0 1
      %335 = vperm.xlu0 %334, %v185
      %v336 = vpop.permute.xlu0 %335
      %338 = vset.pattern.permute.xlu0 1
      %339 = vperm.xlu0 %338, %v186
      %v340 = vpop.permute.xlu0 %339
      %342 = vset.pattern.permute.xlu0 1
      %343 = vperm.xlu0 %342, %v187
      %v344 = vpop.permute.xlu0 %343
      %346 = vset.pattern.permute.xlu0 1
      %347 = vperm.xlu0 %346, %v188
      %v348 = vpop.permute.xlu0 %347
      %350 = vset.pattern.permute.xlu0 1
      %351 = vperm.xlu0 %350, %v189
      %v352 = vpop.permute.xlu0 %351
      %354 = vset.pattern.permute.xlu0 1
      %355 = vperm.xlu0 %354, %v190
      %v356 = vpop.permute.xlu0 %355
      %v358 = vadd.f32 %v278, %v296
      %v359 = vadd.f32 %v279, %v300
      %v360 = vadd.f32 %v280, %v304
      %v361 = vadd.f32 %v281, %v308
      %v362 = vadd.f32 %v282, %v312
      %v363 = vadd.f32 %v283, %v316
      %v364 = vadd.f32 %v284, %v320
      %v365 = vadd.f32 %v285, %v324
      %v366 = vadd.f32 %v286, %v328
      %v367 = vadd.f32 %v287, %v332
      %v368 = vadd.f32 %v288, %v336
      %v369 = vadd.f32 %v289, %v340
      %v370 = vadd.f32 %v290, %v344
      %v371 = vadd.f32 %v291, %v348
      %v372 = vadd.f32 %v292, %v352
      %v373 = vadd.f32 %v293, %v356
      %v374 = vld [vmem:[%s2] sm:$0xff]
      %375 = vmatprep.subr.mxu0 0.0
      %376 = vmatpush1.msra.mxu0 %v373
      %377 = vmatprep.subr.mxu0 0.0
      %378 = vmatpush1.msra.mxu0 %v372
      %379 = vmatprep.subr.mxu0 0.0
      %380 = vmatpush1.msra.mxu0 %v371
      %381 = vmatprep.subr.mxu0 0.0
      %382 = vmatpush1.msra.mxu0 %v370
      %383 = vmatprep.subr.mxu0 0.0
      %384 = vmatpush1.msra.mxu0 %v369
      %385 = vmatprep.subr.mxu0 0.0
      %386 = vmatpush1.msra.mxu0 %v368
      %387 = vmatprep.subr.mxu0 0.0
      %388 = vmatpush1.msra.mxu0 %v367
      %389 = vmatprep.subr.mxu0 0.0
      %390 = vmatpush1.msra.mxu0 %v366
      %391 = vmatprep.subr.mxu0 0.0
      %392 = vmatpush1.msra.mxu0 %v365
      %393 = vmatprep.subr.mxu0 0.0
      %394 = vmatpush1.msra.mxu0 %v364
      %395 = vmatprep.subr.mxu0 0.0
      %396 = vmatpush1.msra.mxu0 %v363
      %397 = vmatprep.subr.mxu0 0.0
      %398 = vmatpush1.msra.mxu0 %v362
      %399 = vmatprep.subr.mxu0 0.0
      %400 = vmatpush1.msra.mxu0 %v361
      %401 = vmatprep.subr.mxu0 0.0
      %402 = vmatpush1.msra.mxu0 %v360
      %403 = vmatprep.subr.mxu0 0.0
      %404 = vmatpush1.msra.mxu0 %v359
      %405 = vmatprep.subr.mxu0 0.0
      %406 = vmatpush1.msra.mxu0 %v358
      %407 = vmatprep.subr.mxu0 0.0
      %408 = vmatpush2.msra.mxu0 0.0
      %409 = vmatprep.subr.mxu0 0.0
      %410 = vmatpush2.msra.mxu0 0.0
      %411 = vmatprep.subr.mxu0 0.0
      %412 = vmatpush2.msra.mxu0 0.0
      %413 = vmatprep.subr.mxu0 0.0
      %414 = vmatpush2.msra.mxu0 0.0
      %415 = vmatprep.subr.mxu0 0.0
      %416 = vmatpush2.msra.mxu0 0.0
      %417 = vmatprep.subr.mxu0 0.0
      %418 = vmatpush2.msra.mxu0 0.0
      %419 = vmatprep.subr.mxu0 0.0
      %420 = vmatpush2.msra.mxu0 0.0
      %421 = vmatprep.subr.mxu0 0.0
      %422 = vmatpush2.msra.mxu0 0.0
      %423 = vmatprep.subr.mxu0 0.0
      %424 = vmatpush2.msra.mxu0 0.0
      %425 = vmatprep.subr.mxu0 0.0
      %426 = vmatpush2.msra.mxu0 0.0
      %427 = vmatprep.subr.mxu0 0.0
      %428 = vmatpush2.msra.mxu0 0.0
      %429 = vmatprep.subr.mxu0 0.0
      %430 = vmatpush2.msra.mxu0 0.0
      %431 = vmatprep.subr.mxu0 0.0
      %432 = vmatpush2.msra.mxu0 0.0
      %433 = vmatprep.subr.mxu0 0.0
      %434 = vmatpush2.msra.mxu0 0.0
      %435 = vmatprep.subr.mxu0 0.0
      %436 = vmatpush2.msra.mxu0 0.0
      %437 = vmatprep.subr.mxu0 0.0
      %438 = vmatpush2.msra.mxu0 0.0
      %439 = vmatprep.mubr.f32.mxu0 0.0
      %440 = vmatmul.mubr.f32.gmra.mxu0 %v374
      %v441 = vpop.f32.mrf.mxu0
      %v442 = vadd.f32 0.0, %v441
      %v443 = vpop.f32.mrf.mxu0
      %444 = vdwg.mxu0
      %p445 = scmp.eq.s32.totalorder %s18, 0
      %p446 = scmp.eq.s32.totalorder %s19, 0
      %p447 = pnand %p445, %p446
      %p448 = pneg %p447
      // Predicated region
      $region33: #{discrete_model_forward.1} parent=31 // pred_check
        _
      $region34: #{discrete_model_forward.1} parent=31 // pred_check_branch
        %450 = sbr.rel (%p447) target = $region36
      $region35: #{discrete_model_forward.1} parent=31 // pred_region
        %vm451 = vcmask 7168
        %452 = vst.msk [vmem:[#allocation2] sm:$0xff] %vm451, -inf
        %453 = vst.msk [vmem:[#allocation3] sm:$0xff] %vm451, 0.0
      $region36: #{discrete_model_forward.1} parent=31 // pred_fallthru
        _
      // Predicated region
      $region37: #{discrete_model_forward.1} parent=31 // pred_check
        %p454 = pneg %p445
      $region38: #{discrete_model_forward.1} parent=31 // pred_check_branch
        %456 = sbr.rel (%p454) target = $region40
      $region39: #{discrete_model_forward.1} parent=31 // pred_region
        %v457 = vld [vmem:[#allocation2] sm:$0xff]
        %vm458 = vcmask 64512
        %v459 = vsel %vm458, %v442, -inf
        %460 = vmax.xlane.f32.xlu0 %v459
        %v461 = vpop.xlane.xlu0 %460
        %v462 = vmax.f32 %v457, %v461
        %v463 = vld [vmem:[#allocation3] sm:$0xff]
        %v464 = vsub.f32 %v457, %v462
        %v465 = vmul.f32 %v464, 1.442695
        %v466 = vpow.pop %v465
        %v467 = vmul.f32 %v463, %v466
        %469 = vset.pattern.permute.xlu0 0
        %470 = vperm.xlu0 %469, %v462
        %v471 = vpop.permute.xlu0 %470
        %v473 = vsub.f32 %v442, %v471
        %v474 = vmul.f32 %v473, 1.442695
        %v475 = vpow.pop %v474
        %v476 = vsel %vm458, %v475, 0.0
        %477 = vadd.xlane.f32.xlu0 %v476
        %v478 = vpop.xlane.xlu0 %477
        %v479 = vadd.f32 %v467, %v478
        %vm480 = vcmask 7168
        %481 = vst.msk [vmem:[#allocation3] sm:$0xff] %vm480, %v479
        %482 = vst.msk [vmem:[#allocation2] sm:$0xff] %vm480, %v462
        %483 = vst.msk [vmem:[%s174] sm:$0xff] %vm458, 0.0
      $region40: #{discrete_model_forward.1} parent=31 // pred_fallthru
        _
      %p484 = scmp.eq.s32.totalorder %s18, 1
      // Predicated region
      $region41: #{discrete_model_forward.1} parent=31 // pred_check
        %p485 = pneg %p484
      $region42: #{discrete_model_forward.1} parent=31 // pred_check_branch
        %487 = sbr.rel (%p485) target = $region44
      $region43: #{discrete_model_forward.1} parent=31 // pred_region
        %v488 = vld [vmem:[#allocation3] sm:$0xff]
        %v489 = vrcp.pop %v488
        %v490 = vld [vmem:[#allocation2] sm:$0xff]
        %492 = vset.pattern.permute.xlu0 0
        %493 = vperm.xlu0 %492, %v490
        %v494 = vpop.permute.xlu0 %493
        %v496 = vsub.f32 %v442, %v494
        %v497 = vmul.f32 %v496, 1.442695
        %v498 = vpow.pop %v497
        %500 = vset.pattern.permute.xlu0 0
        %501 = vperm.xlu0 %500, %v489
        %v502 = vpop.permute.xlu0 %501
        %v504 = vmul.f32 %v498, %v502
        %vm505 = vcmask 64512
        %506 = vst.msk [vmem:[%s174] sm:$0xff] %vm505, %v504
      $region44: #{discrete_model_forward.1} parent=31 // pred_fallthru
        _
      %p507 = scmp.lt.s32.totalorder %s19, 0
      %s508 = scalar_select %p507, %s19, 0
      %s509 = smul.addr %s508, 8
      %s510 = scalar_lea.vmem %s3, %s509
      // Predicated region
      $region45: #{discrete_model_forward.1} parent=31 // pred_check
        %p511 = pneg %p112
      $region46: #{discrete_model_forward.1} parent=31 // pred_check_branch
        %513 = sbr.rel (%p511) target = $region48
      $region47: #{discrete_model_forward.1} parent=31 // pred_region
        _
      $region48: #{discrete_model_forward.1} parent=31 // pred_fallthru
        _
      // Predicated region
      $region49: #{discrete_model_forward.1} parent=31 // pred_check
        %p514 = pneg %p112
      $region50: #{discrete_model_forward.1} parent=31 // pred_check_branch
        %516 = sbr.rel (%p514) target = $region52
      $region51: #{discrete_model_forward.1} parent=31 // pred_region
        %p517 = scmp.lt.s32.totalorder %s19, 0
        %s518 = scalar_select %p517, %s19, 0
        %s519 = smul.addr %s518, 8
        %s520 = scalar_lea.vmem %s3, %s519
      $region52: #{discrete_model_forward.1} parent=31 // pred_fallthru
        _
    $region32: #{discrete_model_forward.1} parent=5 // pred_fallthru
      _
    %p521 = scmp.le.s32.totalorder 2, %s9
    // Predicated region
    $region53: #{discrete_model_forward.1} parent=5 // pred_check
      %p522 = pneg %p521
    $region54: #{discrete_model_forward.1} parent=5 // pred_check_branch
      %524 = sbr.rel (%p522) target = $region56
    $region55: #{discrete_model_forward.1} parent=5 // pred_region
      %s525 = ssub.s32 %s9, 2
    $region56: #{discrete_model_forward.1} parent=5 // pred_fallthru
      _
  $region6: #{discrete_model_forward.1} parent=0 // loop_footer
    %s13 = sadd.s32 1, %s9
  $region7: #{discrete_model_forward.1} parent=0 // loop_footer_branch
    %8 = sbr.rel target = $region3
  $region8: #{discrete_model_forward.1} parent=0 // loop_exit
    _

</llo_original>
